<compile_context>
chip_gen: v6e
topology: v6e:2x2x1
jax: 0.10.0
libtpu: 0.0.40
codegen_flags: <defaults>
</compile_context>

<pallas_src>
import jax
import jax.numpy as jnp
from jax import lax
from jax.experimental import pallas as pl
from jax.experimental.pallas import tpu as pltpu

_LANE = 128
_SUBLANE = 8


def _round_up(x, m):
    return ((x + m - 1) // m) * m


def _task_layer_kernel(h_ref, w_ref, b_ref, o_ref):
    # h_ref : (TB, M)   VMEM   batch tile (batch on sublanes, features on lanes)
    # w_ref : (N8, M)   VMEM   PyTorch Linear.weight, task rows padded to 8
    # b_ref : (N8, 1)   VMEM   bias as a column, padded to 8 rows
    # o_ref : (N8, TB)  VMEM   transposed output tile: batch on the 128-lane axis
    #
    # out[n, b] = sum_m w[n, m] * h[b, m]   (contract the shared last dim,
    # same pattern as the q @ k^T contraction in flash attention).
    acc = lax.dot_general(
        w_ref[...], h_ref[...],
        dimension_numbers=(((1,), (1,)), ((), ())),
        preferred_element_type=jnp.float32,
    )  # (N8, TB)
    o_ref[...] = (acc + b_ref[...]).astype(o_ref.dtype)


def task_layer_forward(h, weight, bias, *, block_b=32768,
                       vmem_budget_bytes=24 * 1024 * 1024):
    """TaskLayer forward (dropout p=0 is identity).

    h:      (B, M)        float32
    weight: (n_tasks, M)  float32   (PyTorch nn.Linear layout)
    bias:   (n_tasks,)    float32
    returns (B, n_tasks)  float32
    """
    B, M = h.shape
    n_tasks = weight.shape[0]

    # ---- Pad the task axis only to 8 sublanes (tiny: n_tasks*M floats). ----
    N8 = _round_up(max(n_tasks, 1), _SUBLANE)
    w_p = jnp.zeros((N8, M), weight.dtype).at[:n_tasks, :].set(weight)
    b_p = jnp.zeros((N8, 1), bias.dtype).at[:n_tasks, 0].set(bias)

    # ---- Batch tile sizing: largest multiple of 128 fitting the VMEM budget
    #      (double-buffered h + out tiles; resident weight/bias subtracted). ----
    tile_row_bytes = (M + N8) * 4 * 2            # h row + out column, double-buffered, f32
    resident_bytes = 2 * (N8 * M + N8) * 4       # weight + bias (double-buffered)
    budget = max(vmem_budget_bytes - resident_bytes, _LANE * tile_row_bytes)
    tb_cap = max(_LANE, (budget // tile_row_bytes) // _LANE * _LANE)
    tb_target = max(_LANE, min(_round_up(block_b, _LANE), tb_cap))

    if B >= _LANE:
        # Multiple-of-128 tile (lane-dense stores); last grid block may be
        # partial for ragged B — OOB reads are harmless, OOB writes are masked.
        TB = min(tb_target, (B // _LANE) * _LANE)
    else:
        # Tiny batch: single full-extent block (no (8,128) constraint applies).
        TB = B
    grid = (pl.cdiv(B, TB),)

    # ---- Explicit scoped-VMEM limit: actual need + headroom, capped at 48 MiB
    #      (v7x has 64 MiB physical per TensorCore — never assume 128 MiB). ----
    vmem_need = TB * tile_row_bytes + resident_bytes
    vmem_limit = int(min(max(vmem_need * 3 // 2 + (4 << 20), 16 << 20), 48 << 20))

    out_t = pl.pallas_call(
        _task_layer_kernel,
        out_shape=jax.ShapeDtypeStruct((N8, B), h.dtype),
        grid=grid,
        in_specs=[
            pl.BlockSpec((TB, M), lambda i: (i, 0)),    # h: tiled over batch
            pl.BlockSpec((N8, M), lambda i: (0, 0)),    # weight: VMEM-resident
            pl.BlockSpec((N8, 1), lambda i: (0, 0)),    # bias:   VMEM-resident
        ],
        out_specs=pl.BlockSpec((N8, TB), lambda i: (0, i)),   # batch on lanes
        compiler_params=pltpu.CompilerParams(
            dimension_semantics=("parallel",),   # independent batch tiles
            vmem_limit_bytes=vmem_limit,
        ),
    )(h, w_p, b_p)

    # (N8, B) -> (B, n_tasks); the transpose touches only n_tasks rows (tiny).
    return out_t[:n_tasks, :].T


if __name__ == "__main__":
    key = jax.random.PRNGKey(0)
    k_w, k_b, k1, k2, k3 = jax.random.split(key, 5)

    in_feats, n_tasks = 32, 4
    bound = 1.0 / (in_feats ** 0.5)
    weight = jax.random.uniform(k_w, (n_tasks, in_feats), dtype=jnp.float32,
                                minval=-bound, maxval=bound)
    bias = jax.random.uniform(k_b, (n_tasks,), dtype=jnp.float32,
                              minval=-bound, maxval=bound)

    def ref(hh):
        return hh @ weight.T + bias

    # Case 1: tiny batch -> single full-extent block.
    h1 = jax.random.normal(k1, (8, in_feats), dtype=jnp.float32)
    o1 = jax.block_until_ready(task_layer_forward(h1, weight, bias))
    assert o1.shape == (8, n_tasks)
    assert jnp.allclose(o1, ref(h1), atol=1e-5, rtol=1e-5)

    # Case 2: ragged batch -> uneven grid with a partial (masked) last block,
    #         no padded copy of h.
    h2 = jax.random.normal(k2, (202, in_feats), dtype=jnp.float32)
    o2 = jax.block_until_ready(task_layer_forward(h2, weight, bias))
    assert o2.shape == (202, n_tasks)
    assert jnp.allclose(o2, ref(h2), atol=1e-5, rtol=1e-5)

    # Case 3: evenly tiled multi-step grid (small forced tile).
    h3 = jax.random.normal(k3, (384, in_feats), dtype=jnp.float32)
    o3 = jax.block_until_ready(task_layer_forward(h3, weight, bias, block_b=128))
    assert o3.shape == (384, n_tasks)
    assert jnp.allclose(o3, ref(h3), atol=1e-5, rtol=1e-5)

    print("KERNEL_OK")
</pallas_src>

<mosaic_0001>
module attributes {stable_mosaic.version = 11 : i64} {
  func.func @_task_layer_kernel(%arg0: i32, %arg1: memref<8x32xf32, #tpu.memory_space<vmem>>, %arg2: memref<8x32xf32, #tpu.memory_space<vmem>>, %arg3: memref<8x1xf32, #tpu.memory_space<vmem>>, %arg4: memref<8x8xf32, #tpu.memory_space<vmem>>) attributes {dimension_semantics = [#tpu.dimension_semantics<parallel>], iteration_bounds = array<i64: 1>, scalar_prefetch = 0 : i64, scratch_operands = 0 : i64, tpu.core_type = #tpu.core_type<tc>, window_params = [{transform_indices = @transform_0, window_bounds = array<i64: 8, 32>}, {pipeline_mode = #tpu.pipeline_mode<synchronous>, transform_indices = @transform_1, window_bounds = array<i64: 8, 32>}, {pipeline_mode = #tpu.pipeline_mode<synchronous>, transform_indices = @transform_2, window_bounds = array<i64: 8, 1>}, {transform_indices = @transform_3, window_bounds = array<i64: 8, 8>}]} {
    %c0 = arith.constant 0 : index
    %c0_0 = arith.constant 0 : index
    %0 = vector.load %arg2[%c0, %c0_0] : memref<8x32xf32, #tpu.memory_space<vmem>>, vector<8x32xf32>
    %c0_1 = arith.constant 0 : index
    %c0_2 = arith.constant 0 : index
    %1 = vector.load %arg1[%c0_1, %c0_2] : memref<8x32xf32, #tpu.memory_space<vmem>>, vector<8x32xf32>
    %cst = arith.constant dense<0.000000e+00> : vector<8x8xf32>
    %2 = tpu.matmul %0, %1, %cst {dimension_numbers = #tpu.dot_dimension_numbers<[1], [1], [0], [0], [0, 0, 1, 0], [], []>} : vector<8x32xf32>, vector<8x32xf32>, vector<8x8xf32> -> vector<8x8xf32>
    %c0_3 = arith.constant 0 : index
    %c0_4 = arith.constant 0 : index
    %3 = vector.load %arg3[%c0_3, %c0_4] : memref<8x1xf32, #tpu.memory_space<vmem>>, vector<8x1xf32>
    %4 = vector.broadcast %3 : vector<8x1xf32> to vector<8x8xf32>
    %5 = arith.addf %2, %4 : vector<8x8xf32>
    %c0_5 = arith.constant 0 : index
    %c0_6 = arith.constant 0 : index
    %6 = vector.load %arg4[%c0_5, %c0_6] : memref<8x8xf32, #tpu.memory_space<vmem>>, vector<8x8xf32>
    tpu.vector_store %arg4[%c0_5, %c0_6], %5 {strides = array<i32>} : memref<8x8xf32, #tpu.memory_space<vmem>>, vector<8x8xf32>,
    return
  }
  func.func @transform_0(%arg0: i32) -> (i32, i32) {
    %c0_i32 = arith.constant 0 : i32
    %c0_i32_0 = arith.constant 0 : i32
    return %arg0, %c0_i32 : i32, i32
  }
  func.func @transform_1(%arg0: i32) -> (i32, i32) {
    %c0_i32 = arith.constant 0 : i32
    %c0_i32_0 = arith.constant 0 : i32
    %c0_i32_1 = arith.constant 0 : i32
    return %c0_i32, %c0_i32_0 : i32, i32
  }
  func.func @transform_2(%arg0: i32) -> (i32, i32) {
    %c0_i32 = arith.constant 0 : i32
    %c0_i32_0 = arith.constant 0 : i32
    %c0_i32_1 = arith.constant 0 : i32
    return %c0_i32, %c0_i32_0 : i32, i32
  }
  func.func @transform_3(%arg0: i32) -> (i32, i32) {
    %c0_i32 = arith.constant 0 : i32
    %c0_i32_0 = arith.constant 0 : i32
    return %c0_i32, %arg0 : i32, i32
  }
}

</mosaic_0001>

<llo_original>
// kernel: tpu_custom_call.1
$region0: #{tpu_custom_call.1}
  #allocation0 [shape = 'u32[]', space=smem, size = 0x4, offset = 0x4, fixed_abs, tag = 'smem constant byte address 0x4 - core index']
  #allocation1 [shape = 'u32[144,128]{1,0:T(1,128)}', space=vmem, size = 0x12000, scoped, tag = 'internal scratch']
  %s0 = inlined_call_operand.vmem [shape: f32[8,32], index: 0, kind: input, shape index: {}]
  %s1 = inlined_call_operand.hbm [shape: f32[8,32], index: 1, kind: input, shape index: {}]
  %s2 = inlined_call_operand.vmem [shape: f32[8,1], index: 2, kind: input, shape index: {}]
  %s3 = inlined_call_operand.hbm [shape: f32[8,8], index: 3, kind: output, shape index: {}]
  %s4 = sld [smem:[#allocation0]]
  $region26: #{tpu_custom_call.1} parent=0
    _
  %s6 = ssub.s32 1, %s4
  %s7 = scalar_select 0, %s6, %s4
  $region1: #{tpu_custom_call.1} parent=0
    #allocation2 [shape = 'u8[4096]{0}', space=vmem, size = 0x1000, scoped, tag = 'input window, operand 1, single buffered']
    #allocation3 [shape = 's32[1]{0}', space=sflag, size = 0x4, scoped, tag = 'scoped memory for tpu_custom_call.1']
    #allocation4 [shape = 's32[1]{0}', space=sflag, size = 0x4, scoped, tag = 'scoped memory for tpu_custom_call.1']
    #allocation5 [shape = 'u8[4096]{0}', space=vmem, size = 0x1000, scoped, tag = 'output window, operand 0, single buffered']
    %8 = vsyncpa [#allocation3], 0
    %9 = vsyncpa [#allocation4], 0
    // Predicated region
    $region2: #{tpu_custom_call.1} parent=1 // pred_check
      _
    $region3: #{tpu_custom_call.1} parent=1 // pred_check_branch
      %11 = sbr.rel (0) target = $region5
    $region4: #{tpu_custom_call.1} parent=1 // pred_region
      _
    $region5: #{tpu_custom_call.1} parent=1 // pred_fallthru
      _
    // Predicated region
    $region6: #{tpu_custom_call.1} parent=1 // pred_check
      _
    $region7: #{tpu_custom_call.1} parent=1 // pred_check_branch
      %13 = sbr.rel (0) target = $region9
    $region8: #{tpu_custom_call.1} parent=1 // pred_region
      %s15 = ssub.s32 128, 128
      %16 = vsyncadd [#allocation3], %s15
      %s18 = sshll.u32 [#allocation2], 4
      %s19 = int_to_ptr.vmem [resolvable:$true] %s18
      %21 = dma.hbm_to_vmem [thread:$0]  %s1, 128, %s19, [#allocation3]
    $region9: #{tpu_custom_call.1} parent=1 // pred_fallthru
      _
    // Predicated region
    $region10: #{tpu_custom_call.1} parent=1 // pred_check
      _
    $region11: #{tpu_custom_call.1} parent=1 // pred_check_branch
      %23 = sbr.rel (0) target = $region13
    $region12: #{tpu_custom_call.1} parent=1 // pred_region
      _
    $region13: #{tpu_custom_call.1} parent=1 // pred_fallthru
      _
    // Predicated region
    $region14: #{tpu_custom_call.1} parent=1 // pred_check
      _
    $region15: #{tpu_custom_call.1} parent=1 // pred_check_branch
      %25 = sbr.rel (0) target = $region17
    $region16: #{tpu_custom_call.1} parent=1 // pred_region
      %26 = dma.done [#allocation3], 128
    $region17: #{tpu_custom_call.1} parent=1 // pred_fallthru
      _
    %v27 = vld [vmem:[#allocation2] sm:$0xff]
    %v28 = vld [vmem:[%s0] sm:$0xff]
    %v29 = vld [vmem:[%s2] sm:$0xff]
    %31 = vset.pattern.permute.xlu0 0
    %32 = vperm.xlu0 %31, %v29
    %v33 = vpop.permute.xlu0 %32
    %vm35 = vcmask 261120
    %v37 = vsel %vm35, %v27, 0
    %v40 = vsel %vm35, %v28, 0
    %42 = vmatprep.subr.mxu0 0.0
    %43 = vmatpush1.xpose.msra.mxu0 0.0
    %44 = vmatprep.subr.mxu0 0.0
    %45 = vmatpush1.xpose.msra.mxu0 0.0
    %46 = vmatprep.subr.mxu0 0.0
    %47 = vmatpush1.xpose.msra.mxu0 0.0
    %48 = vmatprep.subr.mxu0 0.0
    %49 = vmatpush1.xpose.msra.mxu0 0.0
    %50 = vmatprep.subr.mxu0 0.0
    %51 = vmatpush1.xpose.msra.mxu0 0.0
    %52 = vmatprep.subr.mxu0 0.0
    %53 = vmatpush1.xpose.msra.mxu0 0.0
    %54 = vmatprep.subr.mxu0 0.0
    %55 = vmatpush1.xpose.msra.mxu0 0.0
    %56 = vmatprep.subr.mxu0 0.0
    %57 = vmatpush1.xpose.msra.mxu0 0.0
    %58 = vmatprep.subr.mxu0 0.0
    %59 = vmatpush1.xpose.msra.mxu0 0.0
    %60 = vmatprep.subr.mxu0 0.0
    %61 = vmatpush1.xpose.msra.mxu0 0.0
    %62 = vmatprep.subr.mxu0 0.0
    %63 = vmatpush1.xpose.msra.mxu0 0.0
    %64 = vmatprep.subr.mxu0 0.0
    %65 = vmatpush1.xpose.msra.mxu0 0.0
    %66 = vmatprep.subr.mxu0 0.0
    %67 = vmatpush1.xpose.msra.mxu0 0.0
    %68 = vmatprep.subr.mxu0 0.0
    %69 = vmatpush1.xpose.msra.mxu0 0.0
    %70 = vmatprep.subr.mxu0 0.0
    %71 = vmatpush1.xpose.msra.mxu0 0.0
    %72 = vmatprep.subr.mxu0 0.0
    %73 = vmatpush1.xpose.msra.mxu0 %v40
    %74 = vmatprep.subr.mxu0 0.0
    %75 = vmatpush2.xpose.msra.mxu0 0.0
    %76 = vmatprep.subr.mxu0 0.0
    %77 = vmatpush2.xpose.msra.mxu0 0.0
    %78 = vmatprep.subr.mxu0 0.0
    %79 = vmatpush2.xpose.msra.mxu0 0.0
    %80 = vmatprep.subr.mxu0 0.0
    %81 = vmatpush2.xpose.msra.mxu0 0.0
    %82 = vmatprep.subr.mxu0 0.0
    %83 = vmatpush2.xpose.msra.mxu0 0.0
    %84 = vmatprep.subr.mxu0 0.0
    %85 = vmatpush2.xpose.msra.mxu0 0.0
    %86 = vmatprep.subr.mxu0 0.0
    %87 = vmatpush2.xpose.msra.mxu0 0.0
    %88 = vmatprep.subr.mxu0 0.0
    %89 = vmatpush2.xpose.msra.mxu0 0.0
    %90 = vmatprep.subr.mxu0 0.0
    %91 = vmatpush2.xpose.msra.mxu0 0.0
    %92 = vmatprep.subr.mxu0 0.0
    %93 = vmatpush2.xpose.msra.mxu0 0.0
    %94 = vmatprep.subr.mxu0 0.0
    %95 = vmatpush2.xpose.msra.mxu0 0.0
    %96 = vmatprep.subr.mxu0 0.0
    %97 = vmatpush2.xpose.msra.mxu0 0.0
    %98 = vmatprep.subr.mxu0 0.0
    %99 = vmatpush2.xpose.msra.mxu0 0.0
    %100 = vmatprep.subr.mxu0 0.0
    %101 = vmatpush2.xpose.msra.mxu0 0.0
    %102 = vmatprep.subr.mxu0 0.0
    %103 = vmatpush2.xpose.msra.mxu0 0.0
    %104 = vmatprep.subr.mxu0 0.0
    %105 = vmatpush2.xpose.msra.mxu0 0.0
    %106 = vmatprep.mubr.f32.mxu0 0.0
    %107 = vmatmul.mubr.f32.gmra.mxu0 %v37
    %v108 = vpop.f32.mrf.mxu0
    %v109 = vadd.f32 %v33, %v108
    %v110 = vpop.f32.mrf.mxu0
    %111 = vdwg.mxu0
    %vm112 = vcmask 64512
    %113 = vst.msk [vmem:[#allocation5] sm:$0xff] %vm112, %v109
    // Predicated region
    $region18: #{tpu_custom_call.1} parent=1 // pred_check
      _
    $region19: #{tpu_custom_call.1} parent=1 // pred_check_branch
      %115 = sbr.rel (0) target = $region21
    $region20: #{tpu_custom_call.1} parent=1 // pred_region
      %s117 = ssub.s32 128, 128
      %118 = vsyncadd [#allocation4], %s117
      %s120 = sshll.u32 [#allocation5], 4
      %s121 = int_to_ptr.vmem [resolvable:$true] %s120
      %123 = dma.vmem_to_hbm [thread:$0]  %s121, 128, %s3, [#allocation4]
    $region21: #{tpu_custom_call.1} parent=1 // pred_fallthru
      _
    // Predicated region
    $region22: #{tpu_custom_call.1} parent=1 // pred_check
      _
    $region23: #{tpu_custom_call.1} parent=1 // pred_check_branch
      %125 = sbr.rel (0) target = $region25
    $region24: #{tpu_custom_call.1} parent=1 // pred_region
      %126 = dma.done [#allocation4], 128
    $region25: #{tpu_custom_call.1} parent=1 // pred_fallthru
      _
    %127 = vsyncpa [#allocation3], 1
    %128 = vsyncpa [#allocation4], 1

</llo_original>
